<compile_context>
chip_gen: v7x
topology: tpu7x:2x2x1
jax: 0.10.0
libtpu: 0.0.40
codegen_flags: <defaults>
</compile_context>

<pallas_src>
import functools

import jax
import jax.numpy as jnp
import numpy as np
from jax import lax
from jax.experimental import pallas as pl
from jax.experimental.pallas import tpu as pltpu


def _reflect_pad_kernel(left, right, C, T, TB, *refs):
    """One grid step handles TB batch rows.

    refs (in order):
      lp_ref  : VMEM (1, C, left)  precomputed batch-0 left pad   [only if left > 0]
      len_ref : VMEM (TB, 1, 1)    int32 valid lengths of the rows in this block
      x_ref   : VMEM (TB, C, T)    features
      o_ref   : VMEM (TB, C, TP)   output
    """
    if left > 0:
        lp_ref, len_ref, x_ref, o_ref = refs
    else:
        len_ref, x_ref, o_ref = refs

    TP = T + left + right
    x = x_ref[...]                       # (TB, C, T), kept in the input dtype
    dtype = x.dtype

    # ---- static part: [left pad (from batch 0) | body | zero right pad] ----
    pieces = []
    if left > 0:
        pieces.append(jnp.broadcast_to(lp_ref[...], (TB, C, left)))
    pieces.append(x)
    if right > 0:
        pieces.append(jnp.zeros((TB, C, right), dtype))
    base = pieces[0] if len(pieces) == 1 else jnp.concatenate(pieces, axis=-1)

    if right == 0:                       # static fast path: nothing dynamic to do
        o_ref[...] = base
        return

    # ---- dynamic right reflect: out[b, :, L+left+r] = x[b, :, L-2-r] -------
    # dest = L + left + r, src (in the padded frame) = L + left - 2 - r, so the
    # shift is the *static* amount 2 + 2r.  Under the module contract
    # (right + 1 <= L <= T) the selected lanes never touch the zero prefix of
    # the shifted copy, so this is an exact copy of the reflected columns.
    L = len_ref[...]                                         # (TB, 1, 1) int32
    pos = lax.broadcasted_iota(jnp.int32, (TB, C, TP), 2)    # lane index
    rel = pos - (L + left)                                   # (TB, C, TP)

    out = base
    for r in range(right):
        s = 2 + 2 * r                                        # static lane shift
        shifted = jnp.concatenate(
            [jnp.zeros((TB, C, s), dtype), base[..., : TP - s]], axis=-1)
        out = jnp.where(rel == r, shifted, out)
    o_ref[...] = out


def variable_length_reflect_pad(features, lengths, padding, *, batch_block=None):
    """features: (B, C, T) float, lengths: (B,) int, padding: (left, right)."""
    left, right = padding
    B, C, T = features.shape
    TP = T + left + right
    itemsize = jnp.dtype(features.dtype).itemsize

    # --- batch blocking: amortize per-grid-step pipeline overhead -----------
    if batch_block is None:
        # keep the double-buffered (input + output) working set around ~4 MiB
        per_row_bytes = C * (T + TP) * itemsize
        batch_block = (2 * 1024 * 1024) // max(per_row_bytes, 1)
    TB = max(1, min(int(batch_block), B, 128))
    if B > 1:
        # keep at least 2 grid steps so both v7x TensorCores get work
        TB = min(TB, pl.cdiv(B, 2))
    grid = (pl.cdiv(B, TB),)

    lengths3 = lengths.astype(jnp.int32).reshape(B, 1, 1)

    inputs = []
    in_specs = []
    if left > 0:
        # The torch module's left pad is gathered from batch 0 only and then
        # broadcast to all batches, so precompute it once here.
        lp = jnp.flip(features[0:1, :, 1:left + 1], axis=2)        # (1, C, left)
        inputs.append(lp)
        in_specs.append(pl.BlockSpec((1, C, left), lambda i: (0, 0, 0)))
    inputs.append(lengths3)
    in_specs.append(pl.BlockSpec((TB, 1, 1), lambda i: (i, 0, 0)))
    inputs.append(features)
    in_specs.append(pl.BlockSpec((TB, C, T), lambda i: (i, 0, 0)))

    out_spec = pl.BlockSpec((TB, C, TP), lambda i: (i, 0, 0))

    kernel = functools.partial(_reflect_pad_kernel, left, right, C, T, TB)

    bytes_accessed = int((B * C * T + B * C * TP + C * max(left, 0) + B) * itemsize)
    return pl.pallas_call(
        kernel,
        out_shape=jax.ShapeDtypeStruct((B, C, TP), features.dtype),
        grid=grid,
        in_specs=in_specs,
        out_specs=out_spec,
        compiler_params=pltpu.CompilerParams(
            dimension_semantics=("parallel",)),
        cost_estimate=pl.CostEstimate(
            flops=0, transcendentals=0, bytes_accessed=bytes_accessed),
    )(*inputs)


def _reference(features, lengths, padding):
    """NumPy port of the exact PyTorch forward (incl. batch-0 left pad quirk)."""
    left, right = padding
    B, C, T = features.shape
    TP = T + left + right
    padded = np.zeros((B, C, TP), dtype=features.dtype)
    padded[:, :, left:left + T] = features
    if left > 0:
        left_idx = np.arange(left, 0, -1)
        # torch.gather index has batch dim 1 -> gathers from batch 0, broadcasts
        padded[:, :, :left] = features[0:1, :, left_idx]
    for b in range(B):
        L = int(lengths[b])
        for r in range(right):
            padded[b, :, L + left + r] = features[b, :, L - 2 - r]
    return padded


if __name__ == "__main__":
    key = jax.random.PRNGKey(0)
    B, C, T = 2, 4, 16
    padding = (2, 2)

    features = jax.random.normal(key, (B, C, T), dtype=jnp.float32)
    # lengths must satisfy right + 1 <= length <= T (same contract as the torch module)
    lengths = jnp.array([16, 10], dtype=jnp.int32)

    out = variable_length_reflect_pad(features, lengths, padding)
    out = jax.block_until_ready(out)

    ref = _reference(np.asarray(features), np.asarray(lengths), padding)
    np.testing.assert_allclose(np.asarray(out), ref, rtol=1e-6, atol=1e-6)
    print("KERNEL_OK")
</pallas_src>

<mosaic_0001>
module attributes {stable_mosaic.version = 11 : i64} {
  func.func @_reflect_pad_kernel(%arg0: i32, %arg1: memref<1x4x2xf32, #tpu.memory_space<vmem>>, %arg2: memref<1x1x1xi32, #tpu.memory_space<vmem>>, %arg3: memref<1x4x16xf32, #tpu.memory_space<vmem>>, %arg4: memref<1x4x20xf32, #tpu.memory_space<vmem>>) attributes {dimension_semantics = [#tpu.dimension_semantics<parallel>], iteration_bounds = array<i64: 2>, scalar_prefetch = 0 : i64, scratch_operands = 0 : i64, tpu.core_type = #tpu.core_type<tc>, window_params = [{pipeline_mode = #tpu.pipeline_mode<synchronous>, transform_indices = @transform_0, window_bounds = array<i64: 1, 4, 2>}, {transform_indices = @transform_1, window_bounds = array<i64: 1, 1, 1>}, {transform_indices = @transform_2, window_bounds = array<i64: 1, 4, 16>}, {transform_indices = @transform_3, window_bounds = array<i64: 1, 4, 20>}]} {
    %c0 = arith.constant 0 : index
    %c0_0 = arith.constant 0 : index
    %c0_1 = arith.constant 0 : index
    %0 = vector.load %arg3[%c0, %c0_0, %c0_1] : memref<1x4x16xf32, #tpu.memory_space<vmem>>, vector<1x4x16xf32>
    %c0_2 = arith.constant 0 : index
    %c0_3 = arith.constant 0 : index
    %c0_4 = arith.constant 0 : index
    %1 = vector.load %arg1[%c0_2, %c0_3, %c0_4] : memref<1x4x2xf32, #tpu.memory_space<vmem>>, vector<1x4x2xf32>
    %cst = arith.constant 0.000000e+00 : f32
    %2 = vector.broadcast %cst : f32 to vector<1x4x2xf32>
    %3 = tpu.concatenate %1, %0, %2 in 2 : vector<1x4x2xf32>, vector<1x4x16xf32>, vector<1x4x2xf32> -> vector<1x4x20xf32>
    %c0_5 = arith.constant 0 : index
    %c0_6 = arith.constant 0 : index
    %c0_7 = arith.constant 0 : index
    %4 = vector.load %arg2[%c0_5, %c0_6, %c0_7] : memref<1x1x1xi32, #tpu.memory_space<vmem>>, vector<1x1x1xi32>
    %5 = tpu.iota {dimensions = array<i32: 2>} : vector<1x4x20xi32>
    %c2_i32 = arith.constant 2 : i32
    %6 = vector.broadcast %c2_i32 : i32 to vector<1x1x1xi32>
    %7 = arith.addi %4, %6 : vector<1x1x1xi32>
    %8 = vector.broadcast %7 : vector<1x1x1xi32> to vector<1x4x20xi32>
    %9 = arith.subi %5, %8 : vector<1x4x20xi32>
    %cst_8 = arith.constant 0.000000e+00 : f32
    %10 = vector.broadcast %cst_8 : f32 to vector<1x4x2xf32>
    %11 = vector.extract_strided_slice %3 {offsets = [0, 0, 0], sizes = [1, 4, 18], strides = [1, 1, 1]} : vector<1x4x20xf32> to vector<1x4x18xf32>
    %12 = tpu.concatenate %10, %11 in 2 : vector<1x4x2xf32>, vector<1x4x18xf32> -> vector<1x4x20xf32>
    %c0_i32 = arith.constant 0 : i32
    %13 = vector.broadcast %c0_i32 : i32 to vector<1x4x20xi32>
    %14 = arith.cmpi eq, %9, %13 : vector<1x4x20xi32>
    %15 = arith.select %14, %12, %3 : vector<1x4x20xi1>, vector<1x4x20xf32>
    %cst_9 = arith.constant 0.000000e+00 : f32
    %16 = vector.broadcast %cst_9 : f32 to vector<1x4x4xf32>
    %17 = vector.extract_strided_slice %3 {offsets = [0, 0, 0], sizes = [1, 4, 16], strides = [1, 1, 1]} : vector<1x4x20xf32> to vector<1x4x16xf32>
    %18 = tpu.concatenate %16, %17 in 2 : vector<1x4x4xf32>, vector<1x4x16xf32> -> vector<1x4x20xf32>
    %c1_i32 = arith.constant 1 : i32
    %19 = vector.broadcast %c1_i32 : i32 to vector<1x4x20xi32>
    %20 = arith.cmpi eq, %9, %19 : vector<1x4x20xi32>
    %21 = arith.select %20, %18, %15 : vector<1x4x20xi1>, vector<1x4x20xf32>
    %c0_10 = arith.constant 0 : index
    %c0_11 = arith.constant 0 : index
    %c0_12 = arith.constant 0 : index
    %22 = vector.load %arg4[%c0_10, %c0_11, %c0_12] : memref<1x4x20xf32, #tpu.memory_space<vmem>>, vector<1x4x20xf32>
    tpu.vector_store %arg4[%c0_10, %c0_11, %c0_12], %21 {strides = array<i32>} : memref<1x4x20xf32, #tpu.memory_space<vmem>>, vector<1x4x20xf32>,
    return
  }
  func.func @transform_0(%arg0: i32) -> (i32, i32, i32) {
    %c0_i32 = arith.constant 0 : i32
    %c0_i32_0 = arith.constant 0 : i32
    %c0_i32_1 = arith.constant 0 : i32
    %c0_i32_2 = arith.constant 0 : i32
    return %c0_i32, %c0_i32_0, %c0_i32_1 : i32, i32, i32
  }
  func.func @transform_1(%arg0: i32) -> (i32, i32, i32) {
    %c0_i32 = arith.constant 0 : i32
    %c0_i32_0 = arith.constant 0 : i32
    %c0_i32_1 = arith.constant 0 : i32
    return %arg0, %c0_i32, %c0_i32_0 : i32, i32, i32
  }
  func.func @transform_2(%arg0: i32) -> (i32, i32, i32) {
    %c0_i32 = arith.constant 0 : i32
    %c0_i32_0 = arith.constant 0 : i32
    %c0_i32_1 = arith.constant 0 : i32
    return %arg0, %c0_i32, %c0_i32_0 : i32, i32, i32
  }
  func.func @transform_3(%arg0: i32) -> (i32, i32, i32) {
    %c0_i32 = arith.constant 0 : i32
    %c0_i32_0 = arith.constant 0 : i32
    %c0_i32_1 = arith.constant 0 : i32
    return %arg0, %c0_i32, %c0_i32_0 : i32, i32, i32
  }
}

</mosaic_0001>

<llo_original>
// kernel: tpu_custom_call.1
$region0: #{tpu_custom_call.1}
  #allocation0 [shape = 'u32[]', space=smem, size = 0x4, offset = 0x4, fixed_abs, tag = 'smem constant byte address 0x4 - core index']
  #allocation1 [shape = 'u32[144,128]{1,0:T(1,128)}', space=vmem, size = 0x12000, scoped, tag = 'internal scratch']
  %s0 = inlined_call_operand.vmem [shape: f32[1,4,2], index: 0, kind: input, shape index: {}]
  %s1 = inlined_call_operand.vmem [shape: s32[2,1,1], index: 1, kind: input, shape index: {}]
  %s2 = inlined_call_operand.vmem [shape: f32[2,4,16], index: 2, kind: input, shape index: {}]
  %s3 = inlined_call_operand.hbm [shape: f32[2,4,20], index: 3, kind: output, shape index: {}]
  %s4 = sld [smem:[#allocation0]]
  $region45: #{tpu_custom_call.1} parent=0
    _
  %s6 = ssub.s32 1, %s4
  %s7 = scalar_select 0, %s6, %s4
  $region1: #{tpu_custom_call.1} parent=0
    #allocation2 [shape = 'u8[4096]{0}', space=vmem, size = 0x1000, scoped, tag = 'output window, operand 0']
    #allocation3 [shape = 's32[2]{0}', space=sflag, size = 0x8, scoped, tag = 'scoped memory for tpu_custom_call.1']
    %8 = vsyncpa [#allocation3], 0
    %s9 = scalar_lea.sflag [#allocation3], 1
    %10 = vsyncpa %s9, 0
    loop: start=0, step=1, limit=4
    $region2: #{tpu_custom_call.1} parent=1 // loop_pre_header
      _
    $region3: #{tpu_custom_call.1} parent=1 // loop_header
      %s12 = sphi 0, %s16
      %p13 = scmp.ge.s32.totalorder %s12, 4
      %s20 = sphi 0, %s20
      %s22 = sphi 0, %s20
      %s23 = sphi 0, %s22
      %s37 = sphi 0, %s23
      %s43 = sphi 0, %s45
      %s46 = sphi 0, %s43
      %s47 = sphi 0, %s46
      %s63 = sphi 0, %s47
      %s69 = sphi 0, %s71
      %s72 = sphi 0, %s69
      %s73 = sphi 0, %s72
      %s89 = sphi 0, %s73
      %s95 = sphi 0, %s97
      %s98 = sphi 0, %s95
      %s99 = sphi 0, %s98
      %s115 = sphi 0, %s99
    $region4: #{tpu_custom_call.1} parent=1 // loop_header_branch
      %15 = sbr.rel (%p13) target = $region8
    $region5: #{tpu_custom_call.1} parent=1 // loop_body
      %s17 = ssub.s32 %s12, 1
      %s18 = ssub.s32 %s12, 2
      %s19 = sadd.s32 %s12, 1
      %s21 = sadd.s32 %s20, 1
      %p24 = scmp.eq.s32.totalorder %s12, 1
      %p25 = scmp.ne.s32.totalorder %s20, %s22
      %p26 = scmp.eq.s32.totalorder %s12, 0
      %p27 = por %p25, %p26
      %p28 = scmp.ne.s32.totalorder %s20, %s22
      %p29 = scmp.eq.s32.totalorder %s17, 1
      %p30 = por %p28, %p29
      %p31 = scmp.ne.s32.totalorder %s22, %s23
      %p32 = scmp.eq.s32.totalorder %s17, 0
      %p33 = por %p31, %p32
      %p34 = scmp.ne.s32.totalorder %s22, %s23
      %p35 = scmp.eq.s32.totalorder %s18, 1
      %p36 = por %p34, %p35
      %p38 = scmp.ne.s32.totalorder %s23, %s37
      %p39 = scmp.eq.s32.totalorder %s18, 0
      %p40 = por %p38, %p39
      %s41 = ssub.s32 %s12, %s19
      %p42 = scmp.eq.s32.totalorder %s41, 0
      %s44 = sadd.s32 %s43, 1
      %s45 = scalar_select %p42, %s43, %s44
      %p48 = pneg %p42
      %p49 = scmp.eq.s32.totalorder %s12, 1
      %p50 = por %p48, %p49
      %p51 = scmp.ne.s32.totalorder %s43, %s46
      %p52 = scmp.eq.s32.totalorder %s12, 0
      %p53 = por %p51, %p52
      %p54 = scmp.ne.s32.totalorder %s43, %s46
      %p55 = scmp.eq.s32.totalorder %s17, 1
      %p56 = por %p54, %p55
      %p57 = scmp.ne.s32.totalorder %s46, %s47
      %p58 = scmp.eq.s32.totalorder %s17, 0
      %p59 = por %p57, %p58
      %p60 = scmp.ne.s32.totalorder %s46, %s47
      %p61 = scmp.eq.s32.totalorder %s18, 1
      %p62 = por %p60, %p61
      %p64 = scmp.ne.s32.totalorder %s47, %s63
      %p65 = scmp.eq.s32.totalorder %s18, 0
      %p66 = por %p64, %p65
      %s67 = ssub.s32 %s12, %s19
      %p68 = scmp.eq.s32.totalorder %s67, 0
      %s70 = sadd.s32 %s69, 1
      %s71 = scalar_select %p68, %s69, %s70
      %p74 = pneg %p68
      %p75 = scmp.eq.s32.totalorder %s12, 1
      %p76 = por %p74, %p75
      %p77 = scmp.ne.s32.totalorder %s69, %s72
      %p78 = scmp.eq.s32.totalorder %s12, 0
      %p79 = por %p77, %p78
      %p80 = scmp.ne.s32.totalorder %s69, %s72
      %p81 = scmp.eq.s32.totalorder %s17, 1
      %p82 = por %p80, %p81
      %p83 = scmp.ne.s32.totalorder %s72, %s73
      %p84 = scmp.eq.s32.totalorder %s17, 0
      %p85 = por %p83, %p84
      %p86 = scmp.ne.s32.totalorder %s72, %s73
      %p87 = scmp.eq.s32.totalorder %s18, 1
      %p88 = por %p86, %p87
      %p90 = scmp.ne.s32.totalorder %s73, %s89
      %p91 = scmp.eq.s32.totalorder %s18, 0
      %p92 = por %p90, %p91
      %s93 = ssub.s32 %s12, %s19
      %p94 = scmp.eq.s32.totalorder %s93, 0
      %s96 = sadd.s32 %s95, 1
      %s97 = scalar_select %p94, %s95, %s96
      %p100 = pneg %p94
      %p101 = scmp.eq.s32.totalorder %s12, 1
      %p102 = por %p100, %p101
      %p103 = scmp.ne.s32.totalorder %s95, %s98
      %p104 = scmp.eq.s32.totalorder %s12, 0
      %p105 = por %p103, %p104
      %p106 = scmp.ne.s32.totalorder %s95, %s98
      %p107 = scmp.eq.s32.totalorder %s17, 1
      %p108 = por %p106, %p107
      %p109 = scmp.ne.s32.totalorder %s98, %s99
      %p110 = scmp.eq.s32.totalorder %s17, 0
      %p111 = por %p109, %p110
      %p112 = scmp.ne.s32.totalorder %s98, %s99
      %p113 = scmp.eq.s32.totalorder %s18, 1
      %p114 = por %p112, %p113
      %p116 = scmp.ne.s32.totalorder %s99, %s115
      %p117 = scmp.eq.s32.totalorder %s18, 0
      %p118 = por %p116, %p117
      %p119 = scmp.le.s32.totalorder 1, %s12
      %p120 = scmp.lt.s32.totalorder %s12, 3
      %p121 = pnand %p119, %p120
      %p122 = pneg %p121
      // Predicated region
      $region9: #{tpu_custom_call.1} parent=5 // pred_check
        _
      $region10: #{tpu_custom_call.1} parent=5 // pred_check_branch
        %124 = sbr.rel (%p121) target = $region12
      $region11: #{tpu_custom_call.1} parent=5 // pred_region
        %s125 = ssub.s32 %s12, 1
        // Predicated region
        $region13: #{tpu_custom_call.1} parent=11 // pred_check
          %p126 = pneg %p33
        $region14: #{tpu_custom_call.1} parent=11 // pred_check_branch
          %128 = sbr.rel (%p126) target = $region16
        $region15: #{tpu_custom_call.1} parent=11 // pred_region
          _
        $region16: #{tpu_custom_call.1} parent=11 // pred_fallthru
          _
      $region12: #{tpu_custom_call.1} parent=5 // pred_fallthru
        _
      %p129 = scmp.lt.s32.totalorder %s12, 2
      // Predicated region
      $region17: #{tpu_custom_call.1} parent=5 // pred_check
        %p130 = pneg %p129
      $region18: #{tpu_custom_call.1} parent=5 // pred_check_branch
        %132 = sbr.rel (%p130) target = $region20
      $region19: #{tpu_custom_call.1} parent=5 // pred_region
        // Predicated region
        $region21: #{tpu_custom_call.1} parent=19 // pred_check
          %p133 = pneg %p53
        $region22: #{tpu_custom_call.1} parent=19 // pred_check_branch
          %135 = sbr.rel (%p133) target = $region24
        $region23: #{tpu_custom_call.1} parent=19 // pred_region
          %p136 = scmp.lt.s32.totalorder %s12, 1
          %s137 = scalar_select %p136, %s12, 1
          %s138 = scalar_lea.vmem %s1, %s137
        $region24: #{tpu_custom_call.1} parent=19 // pred_fallthru
          _
        // Predicated region
        $region25: #{tpu_custom_call.1} parent=19 // pred_check
          %p139 = pneg %p79
        $region26: #{tpu_custom_call.1} parent=19 // pred_check_branch
          %141 = sbr.rel (%p139) target = $region28
        $region27: #{tpu_custom_call.1} parent=19 // pred_region
          %p142 = scmp.lt.s32.totalorder %s12, 1
          %s143 = scalar_select %p142, %s12, 1
          %s144 = smul.addr %s143, 4
          %s145 = scalar_lea.vmem %s2, %s144
        $region28: #{tpu_custom_call.1} parent=19 // pred_fallthru
          _
      $region20: #{tpu_custom_call.1} parent=5 // pred_fallthru
        _
      %p146 = scmp.le.s32.totalorder 1, %s12
      %p147 = scmp.lt.s32.totalorder %s12, 3
      %p148 = pnand %p146, %p147
      %p149 = pneg %p148
      // Predicated region
      $region29: #{tpu_custom_call.1} parent=5 // pred_check
        _
      $region30: #{tpu_custom_call.1} parent=5 // pred_check_branch
        %151 = sbr.rel (%p148) target = $region32
      $region31: #{tpu_custom_call.1} parent=5 // pred_region
        %s152 = ssub.s32 %s12, 1
        %p153 = pneg %p33
        %p154 = pneg %p30
        %p155 = scmp.lt.s32.totalorder %s17, 1
        %s156 = scalar_select %p155, %s17, 1
        %s157 = scalar_lea.vmem %s1, %s156
        %p158 = pneg %p59
        %p159 = pneg %p56
        %p160 = scmp.lt.s32.totalorder %s17, 1
        %s161 = scalar_select %p160, %s17, 1
        %s162 = smul.addr %s161, 4
        %s163 = scalar_lea.vmem %s2, %s162
        %p164 = pneg %p85
        %p165 = pneg %p82
        %p166 = pneg %p111
        %p167 = pneg %p108
        %s168 = sand.u32 %s98, 1
        %s169 = scalar_lea.sflag [#allocation3], %s168
        %s170 = sand.u32 %s98, 1
        %s171 = smul.addr %s170, 4
        %s172 = scalar_lea.vmem [#allocation2], %s171
        %p173 = scmp.lt.s32.totalorder %s17, 1
        %s174 = scalar_select %p173, %s17, 1
        %s175 = scalar_lea.vmem %s1, %s174
        %p176 = scmp.lt.s32.totalorder %s17, 1
        %s177 = scalar_select %p176, %s17, 1
        %s178 = smul.addr %s177, 4
        %s179 = scalar_lea.vmem %s2, %s178
        %v180 = vld [vmem:[%s179] sm:$0xf]
        %v181 = vld [vmem:[%s0] sm:$0xf]
        %183 = vrot.lane.b32.xlu0 %v180, 2
        %v184 = vpop.permute.xlu0 %183
        %vm186 = vcmask 15360
        %v187 = vsel %vm186, %v181, %v184
        %vm188 = vcmask 146432
        %v189 = vsel %vm188, %v187, 0.0
        %v190 = vld [vmem:[%s175] sm:$0x1]
        %v191 = vlaneseq
        %v192 = vand.u32 %v191, 127
        %v193 = vadd.s32 %v190, 2
        %v194 = vlaneseq
        %v195 = vshrl.u32 %v194, 7
        %v196 = vsub.s32 0, %v195
        %v197 = vrot.slane %v193, %v196
        %198 = vset.pattern.permute.xlu0 0
        %199 = vperm.xlu0 %198, %v197
        %v200 = vpop.permute.xlu0 %199
        %v201 = vsub.s32 %v192, %v200
        %203 = vrot.lane.b32.xlu0 %v189, 2
        %v204 = vpop.permute.xlu0 %203
        %v206 = vsel %vm186, 0.0, %v204
        %vm207 = vcmp.eq.s32.totalorder %v201, 0
        %v208 = vsel %vm207, %v206, %v189
        %209 = vrot.lane.b32.xlu0 %v189, 4
        %v210 = vpop.permute.xlu0 %209
        %vm212 = vcmask 31744
        %v213 = vsel %vm212, 0.0, %v210
        %vm214 = vcmp.eq.s32.totalorder %v201, 1
        %v215 = vsel %vm214, %v213, %v208
        %vm216 = vcmask 158720
        %217 = vst.msk [vmem:[%s172] sm:$0xf] %vm216, %v215
        %s218 = sand.u32 %s98, 1
        %s219 = scalar_lea.sflag [#allocation3], %s218
        %s220 = sand.u32 %s98, 1
        %s221 = smul.addr %s220, 4
        %s222 = scalar_lea.vmem [#allocation2], %s221
        // Predicated region
        $region33: #{tpu_custom_call.1} parent=31 // pred_check
          %p223 = pneg %p108
        $region34: #{tpu_custom_call.1} parent=31 // pred_check_branch
          %225 = sbr.rel (%p223) target = $region36
        $region35: #{tpu_custom_call.1} parent=31 // pred_region
          %s227 = ssub.s32 64, 64
          %228 = vsyncadd %s219, %s227
          %s229 = smul.addr %s17, 64
          %s230 = scalar_lea.hbm %s3, %s229
          %s232 = sshll.u32 %s222, 4
          %s233 = int_to_ptr.vmem [resolvable:$true] %s232
          %235 = dma.vmem_to_hbm [thread:$0]  %s233, 64, %s230, %s219
        $region36: #{tpu_custom_call.1} parent=31 // pred_fallthru
          _
      $region32: #{tpu_custom_call.1} parent=5 // pred_fallthru
        _
      %p236 = scmp.le.s32.totalorder 2, %s12
      // Predicated region
      $region37: #{tpu_custom_call.1} parent=5 // pred_check
        %p237 = pneg %p236
      $region38: #{tpu_custom_call.1} parent=5 // pred_check_branch
        %239 = sbr.rel (%p237) target = $region40
      $region39: #{tpu_custom_call.1} parent=5 // pred_region
        %s240 = ssub.s32 %s12, 2
        // Predicated region
        $region41: #{tpu_custom_call.1} parent=39 // pred_check
          %p241 = pneg %p114
        $region42: #{tpu_custom_call.1} parent=39 // pred_check_branch
          %243 = sbr.rel (%p241) target = $region44
        $region43: #{tpu_custom_call.1} parent=39 // pred_region
          %s244 = sand.u32 %s99, 1
          %s245 = scalar_lea.sflag [#allocation3], %s244
          %s246 = sand.u32 %s99, 1
          %s247 = smul.addr %s246, 4
          %s248 = scalar_lea.vmem [#allocation2], %s247
          %249 = dma.done %s245, 64
        $region44: #{tpu_custom_call.1} parent=39 // pred_fallthru
          _
      $region40: #{tpu_custom_call.1} parent=5 // pred_fallthru
        _
    $region6: #{tpu_custom_call.1} parent=1 // loop_footer
      %s16 = sadd.s32 1, %s12
    $region7: #{tpu_custom_call.1} parent=1 // loop_footer_branch
      %11 = sbr.rel target = $region3
    $region8: #{tpu_custom_call.1} parent=1 // loop_exit
      _
    %250 = vsyncpa [#allocation3], 1
    %s251 = scalar_lea.sflag [#allocation3], 1
    %252 = vsyncpa %s251, 1

</llo_original>
